<compile_context>
chip_gen: v7x
topology: tpu7x:2x2x1
jax: 0.10.0
libtpu: 0.0.40
codegen_flags: <defaults>
</compile_context>

<pallas_src>
import functools

import numpy as np
import jax
import jax.numpy as jnp
from jax.experimental import pallas as pl
from jax.experimental.pallas import tpu as pltpu

# ---- module hyper-parameters (from the PyTorch __init__) ----
CIN, COUT, K = 11, 3, 3
STRIDE, DIL, PAD, OUT_PAD = 2, 2, 4, 3
MIN_VALUE = 0.2512
MAX_VALUE = -8.7365

# padded GEMM tile sizes (sublane x lane friendly, fits one MXU pass)
ROW_PAD = 8      # rows (batch) padded to 8 sublanes
K_PAD = 128      # contraction dim padded to 128 lanes
N_PAD = 128      # output dim padded to 128 lanes


def _kernel(x_ref, m_ref, o_ref):
    # hot path: matmul + clamp_min + clamp_max, all resident in VMEM.
    y = jnp.dot(x_ref[...], m_ref[...], preferred_element_type=jnp.float32)
    y = jnp.maximum(y, MIN_VALUE)   # torch.clamp_min
    y = jnp.minimum(y, MAX_VALUE)   # torch.clamp_max
    o_ref[...] = y


def _out_size(s_in):
    return (s_in - 1) * STRIDE - 2 * PAD + DIL * (K - 1) + OUT_PAD + 1


def _build_gemm_matrix_padded(weight_np, h_in, w_in, h_out, w_out):
    """Scatter ConvTranspose2d weights (Cin, Cout, K, K) into a dense
    pre-padded [K_PAD, N_PAD] matrix. Host-side, runs ONCE at init."""
    k_dim = CIN * h_in * w_in
    n_dim = COUT * h_out * w_out
    assert k_dim <= K_PAD and n_dim <= N_PAD
    m = np.zeros((K_PAD, N_PAD), dtype=np.float32)
    for ci in range(CIN):
        for ih in range(h_in):
            for iw in range(w_in):
                row = (ci * h_in + ih) * w_in + iw
                for co in range(COUT):
                    for kh in range(K):
                        oh = ih * STRIDE - PAD + kh * DIL
                        if not (0 <= oh < h_out):
                            continue
                        for kw in range(K):
                            ow = iw * STRIDE - PAD + kw * DIL
                            if not (0 <= ow < w_out):
                                continue
                            col = (co * h_out + oh) * w_out + ow
                            m[row, col] += weight_np[ci, co, kh, kw]
    return m


@functools.partial(jax.jit, static_argnames=("h_out", "w_out"))
def _forward(x, m_p, *, h_out, w_out):
    """Fused: pad x -> single-tile Pallas GEMM+clamp -> slice -> reshape."""
    n, cin, h_in, w_in = x.shape
    k_dim = cin * h_in * w_in
    n_dim = COUT * h_out * w_out
    rows = max(ROW_PAD, -(-n // ROW_PAD) * ROW_PAD)

    x_flat = x.reshape(n, k_dim).astype(jnp.float32)
    x_p = jnp.zeros((rows, K_PAD), jnp.float32).at[:n, :k_dim].set(x_flat)

    out_p = pl.pallas_call(
        _kernel,
        out_shape=jax.ShapeDtypeStruct((rows, N_PAD), jnp.float32),
        in_specs=[
            pl.BlockSpec(memory_space=pltpu.MemorySpace.VMEM),
            pl.BlockSpec(memory_space=pltpu.MemorySpace.VMEM),
        ],
        out_specs=pl.BlockSpec(memory_space=pltpu.MemorySpace.VMEM),
    )(x_p, m_p)

    y = out_p[:n, :n_dim]
    return y.reshape(n, COUT, h_out, w_out)


class ConvTransposeClamp:
    """Mirrors the PyTorch Model: holds the weight, caches the (padded) GEMM
    scatter matrix per spatial size, and exposes a jitted forward."""

    def __init__(self, weight):
        self._weight_np = np.asarray(weight, dtype=np.float32)
        assert self._weight_np.shape == (CIN, COUT, K, K)
        self._m_cache = {}   # (h_in, w_in) -> device array [K_PAD, N_PAD]

    def _get_m(self, h_in, w_in, h_out, w_out):
        key = (h_in, w_in)
        if key not in self._m_cache:
            m_np = _build_gemm_matrix_padded(self._weight_np, h_in, w_in,
                                             h_out, w_out)
            self._m_cache[key] = jnp.asarray(m_np)   # one-time host->device copy
        return self._m_cache[key]

    def __call__(self, x):
        n, cin, h_in, w_in = x.shape
        assert cin == CIN
        h_out, w_out = _out_size(h_in), _out_size(w_in)
        m_p = self._get_m(h_in, w_in, h_out, w_out)
        return _forward(x, m_p, h_out=h_out, w_out=w_out)


if __name__ == "__main__":
    key = jax.random.PRNGKey(0)
    kx, kw = jax.random.split(key)

    # inputs consistent with the module: x1 = torch.randn(1, 11, 2, 2)
    x1 = jax.random.normal(kx, (1, CIN, 2, 2), dtype=jnp.float32)

    # deterministic weight init (ConvTranspose2d weight shape: (Cin, Cout, K, K))
    fan_in = COUT * K * K
    bound = 1.0 / np.sqrt(fan_in)
    weight = jax.random.uniform(kw, (CIN, COUT, K, K), jnp.float32,
                                minval=-bound, maxval=bound)

    model = ConvTransposeClamp(weight)
    out = model(x1)
    out = jax.block_until_ready(out)

    # sanity: clamp_min then clamp_max with max < min forces all finite values
    # to max_value (exactly the PyTorch module's behavior).
    assert out.shape == (1, COUT, 2, 2)
    assert bool(jnp.all(jnp.abs(out - MAX_VALUE) < 1e-6))
    print("KERNEL_OK")
</pallas_src>

<mosaic_0001>
module attributes {stable_mosaic.version = 11 : i64} {
  func.func @_kernel(%arg0: memref<8x128xf32, #tpu.memory_space<vmem>>, %arg1: memref<128x128xf32, #tpu.memory_space<vmem>>, %arg2: memref<8x128xf32, #tpu.memory_space<vmem>>) attributes {dimension_semantics = [], scalar_prefetch = 0 : i64, scratch_operands = 0 : i64, tpu.core_type = #tpu.core_type<tc>} {
    %c0 = arith.constant 0 : index
    %c0_0 = arith.constant 0 : index
    %0 = vector.load %arg0[%c0, %c0_0] : memref<8x128xf32, #tpu.memory_space<vmem>>, vector<8x128xf32>
    %c0_1 = arith.constant 0 : index
    %c0_2 = arith.constant 0 : index
    %1 = vector.load %arg1[%c0_1, %c0_2] : memref<128x128xf32, #tpu.memory_space<vmem>>, vector<128x128xf32>
    %cst = arith.constant dense<0.000000e+00> : vector<8x128xf32>
    %2 = tpu.matmul %0, %1, %cst {dimension_numbers = #tpu.dot_dimension_numbers<[1], [0], [0], [1], [0, 0, 1, 1], [], []>} : vector<8x128xf32>, vector<128x128xf32>, vector<8x128xf32> -> vector<8x128xf32>
    %cst_3 = arith.constant 2.512000e-01 : f32
    %3 = vector.broadcast %cst_3 : f32 to vector<8x128xf32>
    %4 = arith.maximumf %2, %3 : vector<8x128xf32>
    %cst_4 = arith.constant -8.736500e+00 : f32
    %5 = vector.broadcast %cst_4 : f32 to vector<8x128xf32>
    %6 = arith.minimumf %4, %5 : vector<8x128xf32>
    %c0_5 = arith.constant 0 : index
    %c0_6 = arith.constant 0 : index
    %7 = vector.load %arg2[%c0_5, %c0_6] : memref<8x128xf32, #tpu.memory_space<vmem>>, vector<8x128xf32>
    tpu.vector_store %arg2[%c0_5, %c0_6], %6 {strides = array<i32>} : memref<8x128xf32, #tpu.memory_space<vmem>>, vector<8x128xf32>,
    return
  }
}

</mosaic_0001>

<llo_original>
// kernel: _forward.1
$region0: #{_forward.1}
  #allocation0 [shape = 'u32[]', space=smem, size = 0x4, offset = 0x4, fixed_abs, tag = 'smem constant byte address 0x4 - core index']
  #allocation1 [shape = 'u32[144,128]{1,0:T(1,128)}', space=vmem, size = 0x12000, scoped, tag = 'internal scratch']
  %s0 = inlined_call_operand.vmem [shape: f32[8,128], index: 0, kind: input, shape index: {}]
  %s1 = inlined_call_operand.hbm [shape: f32[128,128], index: 1, kind: input, shape index: {}]
  %s2 = inlined_call_operand.vmem [shape: f32[8,128], index: 2, kind: output, shape index: {}]
  %s3 = sld [smem:[#allocation0]]
  $region22: #{_forward.1} parent=0
    _
  %s5 = ssub.s32 1, %s3
  %s6 = scalar_select 0, %s5, %s3
  $region1: #{_forward.1} parent=0
    #allocation2 [shape = 'u8[65536]{0}', space=vmem, size = 0x10000, scoped, tag = 'input window, operand 1, single buffered']
    #allocation3 [shape = 's32[1]{0}', space=sflag, size = 0x4, scoped, tag = 'scoped memory for _forward.1']
    %7 = vsyncpa [#allocation3], 0
    // Predicated region
    $region2: #{_forward.1} parent=1 // pred_check
      _
    $region3: #{_forward.1} parent=1 // pred_check_branch
      %9 = sbr.rel (0) target = $region5
    $region4: #{_forward.1} parent=1 // pred_region
      _
    $region5: #{_forward.1} parent=1 // pred_fallthru
      _
    // Predicated region
    $region6: #{_forward.1} parent=1 // pred_check
      _
    $region7: #{_forward.1} parent=1 // pred_check_branch
      %11 = sbr.rel (0) target = $region9
    $region8: #{_forward.1} parent=1 // pred_region
      %s13 = ssub.s32 2048, 2048
      %14 = vsyncadd [#allocation3], %s13
      %s15 = sshll.u32 [#allocation2], 4
      %s16 = int_to_ptr.vmem [resolvable:$true] %s15
      %21 = dma.hbm_to_vmem [thread:$0]  %s1, 2048, %s16, [#allocation3], 128, 128, 8
    $region9: #{_forward.1} parent=1 // pred_fallthru
      _
    // Predicated region
    $region10: #{_forward.1} parent=1 // pred_check
      _
    $region11: #{_forward.1} parent=1 // pred_check_branch
      %23 = sbr.rel (0) target = $region13
    $region12: #{_forward.1} parent=1 // pred_region
      %24 = dma.done [#allocation3], 2048
    $region13: #{_forward.1} parent=1 // pred_fallthru
      _
    %v25 = vld [vmem:[%s0] sm:$0xff]
    %v26 = vld [vmem:[#allocation2] sm:$0xff]
    %v27 = vld [vmem:[#allocation2 + $0x8] sm:$0xff]
    %v28 = vld [vmem:[#allocation2 + $0x10] sm:$0xff]
    %v29 = vld [vmem:[#allocation2 + $0x18] sm:$0xff]
    %v30 = vld [vmem:[#allocation2 + $0x20] sm:$0xff]
    %v31 = vld [vmem:[#allocation2 + $0x28] sm:$0xff]
    %v32 = vld [vmem:[#allocation2 + $0x30] sm:$0xff]
    %v33 = vld [vmem:[#allocation2 + $0x38] sm:$0xff]
    %v34 = vld [vmem:[#allocation2 + $0x40] sm:$0xff]
    %v35 = vld [vmem:[#allocation2 + $0x48] sm:$0xff]
    %v36 = vld [vmem:[#allocation2 + $0x50] sm:$0xff]
    %v37 = vld [vmem:[#allocation2 + $0x58] sm:$0xff]
    %v38 = vld [vmem:[#allocation2 + $0x60] sm:$0xff]
    %v39 = vld [vmem:[#allocation2 + $0x68] sm:$0xff]
    %v40 = vld [vmem:[#allocation2 + $0x70] sm:$0xff]
    %v41 = vld [vmem:[#allocation2 + $0x78] sm:$0xff]
    %42 = vmatprep.subr.mxu0 0.0
    %43 = vmatpush1.msra.mxu0 %v26
    %44 = vmatprep.subr.mxu0 0.0
    %45 = vmatpush1.msra.mxu0 %v27
    %46 = vmatprep.subr.mxu0 0.0
    %47 = vmatpush1.msra.mxu0 %v28
    %48 = vmatprep.subr.mxu0 0.0
    %49 = vmatpush1.msra.mxu0 %v29
    %50 = vmatprep.subr.mxu0 0.0
    %51 = vmatpush1.msra.mxu0 %v30
    %52 = vmatprep.subr.mxu0 0.0
    %53 = vmatpush1.msra.mxu0 %v31
    %54 = vmatprep.subr.mxu0 0.0
    %55 = vmatpush1.msra.mxu0 %v32
    %56 = vmatprep.subr.mxu0 0.0
    %57 = vmatpush1.msra.mxu0 %v33
    %58 = vmatprep.subr.mxu0 0.0
    %59 = vmatpush1.msra.mxu0 %v34
    %60 = vmatprep.subr.mxu0 0.0
    %61 = vmatpush1.msra.mxu0 %v35
    %62 = vmatprep.subr.mxu0 0.0
    %63 = vmatpush1.msra.mxu0 %v36
    %64 = vmatprep.subr.mxu0 0.0
    %65 = vmatpush1.msra.mxu0 %v37
    %66 = vmatprep.subr.mxu0 0.0
    %67 = vmatpush1.msra.mxu0 %v38
    %68 = vmatprep.subr.mxu0 0.0
    %69 = vmatpush1.msra.mxu0 %v39
    %70 = vmatprep.subr.mxu0 0.0
    %71 = vmatpush1.msra.mxu0 %v40
    %72 = vmatprep.subr.mxu0 0.0
    %73 = vmatpush1.msra.mxu0 %v41
    %74 = vmatprep.subr.mxu0 0.0
    %75 = vmatpush1.msra.mxu0 0.0
    %76 = vmatprep.subr.mxu0 0.0
    %77 = vmatpush1.msra.mxu0 0.0
    %78 = vmatprep.subr.mxu0 0.0
    %79 = vmatpush1.msra.mxu0 0.0
    %80 = vmatprep.subr.mxu0 0.0
    %81 = vmatpush1.msra.mxu0 0.0
    %82 = vmatprep.subr.mxu0 0.0
    %83 = vmatpush1.msra.mxu0 0.0
    %84 = vmatprep.subr.mxu0 0.0
    %85 = vmatpush1.msra.mxu0 0.0
    %86 = vmatprep.subr.mxu0 0.0
    %87 = vmatpush1.msra.mxu0 0.0
    %88 = vmatprep.subr.mxu0 0.0
    %89 = vmatpush1.msra.mxu0 0.0
    %90 = vmatprep.subr.mxu0 0.0
    %91 = vmatpush1.msra.mxu0 0.0
    %92 = vmatprep.subr.mxu0 0.0
    %93 = vmatpush1.msra.mxu0 0.0
    %94 = vmatprep.subr.mxu0 0.0
    %95 = vmatpush1.msra.mxu0 0.0
    %96 = vmatprep.subr.mxu0 0.0
    %97 = vmatpush1.msra.mxu0 0.0
    %98 = vmatprep.subr.mxu0 0.0
    %99 = vmatpush1.msra.mxu0 0.0
    %100 = vmatprep.subr.mxu0 0.0
    %101 = vmatpush1.msra.mxu0 0.0
    %102 = vmatprep.subr.mxu0 0.0
    %103 = vmatpush1.msra.mxu0 0.0
    %104 = vmatprep.subr.mxu0 0.0
    %105 = vmatpush1.msra.mxu0 0.0
    %106 = vmatprep.mubr.f32.mxu0 0.0
    %107 = vmatmul.mubr.f32.gmra.mrb[0].mxu0 %v25
    %v108 = vpop.f32.mrb[0].mxu0
    %v109 = vadd.f32 0.0, %v108
    %v110 = vpop.f32.mrb[0].mxu0
    %111 = vdwg.mxu0
    %v112 = vmax.f32 %v109, 0.2512
    %v113 = vmin.f32 %v112, -8.7365
    %114 = vst [vmem:[%s2] sm:$0xff] %v113
    // Predicated region
    $region14: #{_forward.1} parent=1 // pred_check
      _
    $region15: #{_forward.1} parent=1 // pred_check_branch
      %116 = sbr.rel (0) target = $region17
    $region16: #{_forward.1} parent=1 // pred_region
      _
    $region17: #{_forward.1} parent=1 // pred_fallthru
      _
    // Predicated region
    $region18: #{_forward.1} parent=1 // pred_check
      _
    $region19: #{_forward.1} parent=1 // pred_check_branch
      %118 = sbr.rel (0) target = $region21
    $region20: #{_forward.1} parent=1 // pred_region
      _
    $region21: #{_forward.1} parent=1 // pred_fallthru
      _
    %119 = vsyncpa [#allocation3], 1

</llo_original>
